<compile_context>
chip_gen: v5e
topology: v5e:2x2
jax: 0.10.0
libtpu: 0.0.40
codegen_flags: <defaults>
</compile_context>

<pallas_src>
import math

import jax
import jax.numpy as jnp
from jax.experimental import pallas as pl
from jax.experimental.pallas import tpu as pltpu


# ----------------------------- Pallas kernel --------------------------------

def _rope_apply_kernel(x_ref, cos_ref, sin_ref, rot_ref, o_ref):
    # out = x * cos + rotate_every_two(x) * sin
    # rotate_every_two is a lane-pair swap-with-sign, done as one MXU matmul
    # against a resident (L, L) signed permutation matrix.
    x = x_ref[...].astype(jnp.float32)                               # (TM, L)
    rot = jnp.dot(x, rot_ref[...].astype(jnp.float32),
                  preferred_element_type=jnp.float32)                # (TM, L)
    y = (x * cos_ref[...].astype(jnp.float32)
         + rot * sin_ref[...].astype(jnp.float32))
    o_ref[...] = y.astype(o_ref.dtype)


# ----------------------------- helpers (plain JAX) ---------------------------

def _rotate_every_two_matrix(L, dtype):
    """R such that (x @ R)[..., 2j] = -x[..., 2j+1] and (x @ R)[..., 2j+1] = x[..., 2j]."""
    rows = jnp.arange(L)[:, None]
    cols = jnp.arange(L)[None, :]
    even_col = (cols % 2) == 0
    r = jnp.where(even_col & (rows == cols + 1), -1.0,
                  jnp.where(jnp.logical_not(even_col) & (rows == cols - 1), 1.0, 0.0))
    return r.astype(dtype)


def _get_sin_cos(seq):
    """seq: (n, d4). Returns sin, cos of shape (n*n, 4*d4), pair-repeated on lanes."""
    n, d4 = seq.shape
    x_sinu = jnp.broadcast_to(seq[:, None, :], (n, n, d4))   # [i, j, :] = seq[i]
    y_sinu = jnp.broadcast_to(seq[None, :, :], (n, n, d4))   # [i, j, :] = seq[j]
    sin = jnp.concatenate([jnp.sin(x_sinu), jnp.sin(y_sinu)], axis=-1)  # (n, n, 2*d4)
    cos = jnp.concatenate([jnp.cos(x_sinu), jnp.cos(y_sinu)], axis=-1)
    sin = sin.reshape(n * n, 2 * d4)
    cos = cos.reshape(n * n, 2 * d4)
    sin = jnp.repeat(sin, 2, axis=-1)                        # [s0, s0, s1, s1, ...]
    cos = jnp.repeat(cos, 2, axis=-1)
    return sin, cos


# ----------------------------- Pallas wrapper --------------------------------

def _apply_rotary_pallas(x, sin, cos, *, tm_target=512):
    """y = x * cos + rotate_every_two(x) * sin.

    x:        (..., N, D)
    sin, cos: (N, D) pair-repeated tables (broadcast over leading dims).
    """
    orig_shape = x.shape
    *lead, N, D = x.shape
    BH = int(math.prod(lead))

    # Fold consecutive sequence positions into the lane axis so the last dim is
    # a dense multiple of 128 (lane-dense stores, no vreg padding).
    F = 1
    if D < 128 and (128 % D == 0) and (N % (128 // D) == 0):
        F = 128 // D
    L = F * D
    RN = N // F

    # Row tile: as large as fits the target while dividing evenly and keeping
    # the (8, 128) BlockSpec constraint (multiple of 8, or the full extent).
    if RN <= tm_target:
        TM = RN
    else:
        TM = RN
        for t in range(min(tm_target, RN), 7, -1):
            if RN % t == 0 and t % 8 == 0:
                TM = t
                break
    row_tiles = RN // TM

    x3 = x.reshape(BH, RN, L)
    cos2 = cos.reshape(RN, L).astype(x.dtype)
    sin2 = sin.reshape(RN, L).astype(x.dtype)
    rot = _rotate_every_two_matrix(L, x.dtype)

    itemsize = jnp.dtype(x.dtype).itemsize
    cost = pl.CostEstimate(
        flops=int(BH * RN * (2 * L * L + 3 * L)),
        transcendentals=0,
        bytes_accessed=int((2 * x3.size + cos2.size + sin2.size + rot.size) * itemsize),
    )

    out = pl.pallas_call(
        _rope_apply_kernel,
        out_shape=jax.ShapeDtypeStruct((BH, RN, L), x.dtype),
        grid=(BH, row_tiles),
        in_specs=[
            pl.BlockSpec((None, TM, L), lambda b, i: (b, i, 0)),  # x tile
            pl.BlockSpec((TM, L), lambda b, i: (i, 0)),           # cos tile (bcast over BH)
            pl.BlockSpec((TM, L), lambda b, i: (i, 0)),           # sin tile (bcast over BH)
            pl.BlockSpec((L, L), lambda b, i: (0, 0)),            # pair-swap matrix, resident
        ],
        out_specs=pl.BlockSpec((None, TM, L), lambda b, i: (b, i, 0)),
        compiler_params=pltpu.CompilerParams(
            dimension_semantics=("parallel", "parallel")),
        cost_estimate=cost,
    )(x3, cos2, sin2, rot)
    return out.reshape(orig_shape)


# ----------------------------- module equivalent -----------------------------

class RotaryEmbedding:
    """JAX/Pallas equivalent of the PyTorch RotaryEmbedding(nn.Module)."""

    def __init__(self, dim, downsample_keys=1):
        self.dim = dim
        self.downsample_keys = downsample_keys

    def __call__(self, q, k):
        n = int(round(math.sqrt(q.shape[-2])))
        seq = jnp.linspace(-1.0, 1.0, n, dtype=jnp.float32)[:, None]          # (n, 1)
        scales = jnp.logspace(0.0, math.log(10 / 2) / math.log(2),
                              self.dim // 4, base=2.0, dtype=jnp.float32)      # (dim//4,)
        seq = seq * scales[None, :] * math.pi                                  # (n, dim//4)

        x_seq = seq
        y_seq = seq.reshape(n // self.downsample_keys, self.downsample_keys, -1).mean(axis=1)

        # Tiny (N, dim) tables built in plain JAX (transcendentals on O(N*dim)
        # data); the O(B*H*N*dim) apply is the Pallas kernel.
        q_sin, q_cos = _get_sin_cos(x_seq)
        k_sin, k_cos = _get_sin_cos(y_seq)

        q_out = _apply_rotary_pallas(q, q_sin, q_cos)
        k_out = _apply_rotary_pallas(k, k_sin, k_cos)
        return q_out, k_out


# ----------------------------- pure-JAX reference ----------------------------

def _rotate_every_two_ref(x):
    x1 = x[..., 0::2]
    x2 = x[..., 1::2]
    return jnp.stack([-x2, x1], axis=-1).reshape(x.shape)


def _reference_rope(q, k, dim, downsample_keys=1):
    n = int(round(math.sqrt(q.shape[-2])))
    seq = jnp.linspace(-1.0, 1.0, n, dtype=jnp.float32)[:, None]
    scales = jnp.logspace(0.0, math.log(10 / 2) / math.log(2),
                          dim // 4, base=2.0, dtype=jnp.float32)
    seq = seq * scales[None, :] * math.pi
    xs = seq
    ys = seq.reshape(n // downsample_keys, downsample_keys, -1).mean(axis=1)
    q_sin, q_cos = _get_sin_cos(xs)
    k_sin, k_cos = _get_sin_cos(ys)
    q_sin, q_cos = q_sin[None, None], q_cos[None, None]
    k_sin, k_cos = k_sin[None, None], k_cos[None, None]
    q_out = q * q_cos + _rotate_every_two_ref(q) * q_sin
    k_out = k * k_cos + _rotate_every_two_ref(k) * k_sin
    return q_out, k_out


# ---------------------------------- main --------------------------------------

if __name__ == "__main__":
    B, H, n, dim = 2, 2, 8, 32
    N = n * n                                 # 64 (spatial seq = n^2)
    key = jax.random.PRNGKey(0)
    kq, kk = jax.random.split(key)
    q = jax.random.normal(kq, (B, H, N, dim), dtype=jnp.float32)
    k = jax.random.normal(kk, (B, H, N, dim), dtype=jnp.float32)

    rope = RotaryEmbedding(dim=dim, downsample_keys=1)
    q_out, k_out = rope(q, k)
    q_out = jax.block_until_ready(q_out)
    k_out = jax.block_until_ready(k_out)

    q_ref, k_ref = _reference_rope(q, k, dim, downsample_keys=1)
    ok = bool(jnp.allclose(q_out, q_ref, atol=1e-4, rtol=1e-4))
    ok &= bool(jnp.allclose(k_out, k_ref, atol=1e-4, rtol=1e-4))

    if ok:
        print("KERNEL_OK")
    else:
        raise SystemExit("mismatch vs reference")
</pallas_src>

<mosaic_0001>
module attributes {stable_mosaic.version = 11 : i64} {
  func.func @_rope_apply_kernel(%arg0: i32, %arg1: i32, %arg2: memref<1x16x128xf32, #tpu.memory_space<vmem>>, %arg3: memref<16x128xf32, #tpu.memory_space<vmem>>, %arg4: memref<16x128xf32, #tpu.memory_space<vmem>>, %arg5: memref<128x128xf32, #tpu.memory_space<vmem>>, %arg6: memref<1x16x128xf32, #tpu.memory_space<vmem>>) attributes {dimension_semantics = [#tpu.dimension_semantics<parallel>, #tpu.dimension_semantics<parallel>], iteration_bounds = array<i64: 4, 1>, scalar_prefetch = 0 : i64, scratch_operands = 0 : i64, tpu.core_type = #tpu.core_type<tc>, window_params = [{transform_indices = @transform_0, window_bounds = array<i64: 1, 16, 128>}, {transform_indices = @transform_1, window_bounds = array<i64: 16, 128>}, {transform_indices = @transform_2, window_bounds = array<i64: 16, 128>}, {pipeline_mode = #tpu.pipeline_mode<synchronous>, transform_indices = @transform_3, window_bounds = array<i64: 128, 128>}, {transform_indices = @transform_4, window_bounds = array<i64: 1, 16, 128>}]} {
    %c0 = arith.constant 0 : index
    %c0_0 = arith.constant 0 : index
    %c0_1 = arith.constant 0 : index
    %0 = vector.load %arg2[%c0, %c0_0, %c0_1] : memref<1x16x128xf32, #tpu.memory_space<vmem>>, vector<1x16x128xf32>
    %1 = vector.shape_cast %0 : vector<1x16x128xf32> to vector<16x128xf32>
    %c0_2 = arith.constant 0 : index
    %c0_3 = arith.constant 0 : index
    %2 = vector.load %arg5[%c0_2, %c0_3] : memref<128x128xf32, #tpu.memory_space<vmem>>, vector<128x128xf32>
    %cst = arith.constant dense<0.000000e+00> : vector<16x128xf32>
    %3 = tpu.matmul %1, %2, %cst {dimension_numbers = #tpu.dot_dimension_numbers<[1], [0], [0], [1], [0, 0, 1, 1], [], []>} : vector<16x128xf32>, vector<128x128xf32>, vector<16x128xf32> -> vector<16x128xf32>
    %c0_4 = arith.constant 0 : index
    %c0_5 = arith.constant 0 : index
    %4 = vector.load %arg3[%c0_4, %c0_5] : memref<16x128xf32, #tpu.memory_space<vmem>>, vector<16x128xf32>
    %5 = arith.mulf %1, %4 : vector<16x128xf32>
    %c0_6 = arith.constant 0 : index
    %c0_7 = arith.constant 0 : index
    %6 = vector.load %arg4[%c0_6, %c0_7] : memref<16x128xf32, #tpu.memory_space<vmem>>, vector<16x128xf32>
    %7 = arith.mulf %3, %6 : vector<16x128xf32>
    %8 = arith.addf %5, %7 : vector<16x128xf32>
    %c0_8 = arith.constant 0 : index
    %c0_9 = arith.constant 0 : index
    %c0_10 = arith.constant 0 : index
    %9 = vector.load %arg6[%c0_8, %c0_9, %c0_10] : memref<1x16x128xf32, #tpu.memory_space<vmem>>, vector<1x16x128xf32>
    %10 = vector.shape_cast %9 : vector<1x16x128xf32> to vector<16x128xf32>
    %11 = vector.shape_cast %8 : vector<16x128xf32> to vector<1x16x128xf32>
    tpu.vector_store %arg6[%c0_8, %c0_9, %c0_10], %11 {strides = array<i32>} : memref<1x16x128xf32, #tpu.memory_space<vmem>>, vector<1x16x128xf32>,
    return
  }
  func.func @transform_0(%arg0: i32, %arg1: i32) -> (i32, i32, i32) {
    %c0_i32 = arith.constant 0 : i32
    %c0_i32_0 = arith.constant 0 : i32
    return %arg0, %arg1, %c0_i32 : i32, i32, i32
  }
  func.func @transform_1(%arg0: i32, %arg1: i32) -> (i32, i32) {
    %c0_i32 = arith.constant 0 : i32
    %c0_i32_0 = arith.constant 0 : i32
    return %arg1, %c0_i32 : i32, i32
  }
  func.func @transform_2(%arg0: i32, %arg1: i32) -> (i32, i32) {
    %c0_i32 = arith.constant 0 : i32
    %c0_i32_0 = arith.constant 0 : i32
    return %arg1, %c0_i32 : i32, i32
  }
  func.func @transform_3(%arg0: i32, %arg1: i32) -> (i32, i32) {
    %c0_i32 = arith.constant 0 : i32
    %c0_i32_0 = arith.constant 0 : i32
    %c0_i32_1 = arith.constant 0 : i32
    return %c0_i32, %c0_i32_0 : i32, i32
  }
  func.func @transform_4(%arg0: i32, %arg1: i32) -> (i32, i32, i32) {
    %c0_i32 = arith.constant 0 : i32
    %c0_i32_0 = arith.constant 0 : i32
    return %arg0, %arg1, %c0_i32 : i32, i32, i32
  }
}

</mosaic_0001>

<llo_original>
// kernel: tpu_custom_call.1
$region0: #{tpu_custom_call.1}
  #allocation0 [shape = 'u32[]', space=smem, size = 0x4, offset = 0x4, fixed_abs, tag = 'smem constant byte address 0x4 - core index']
  #allocation1 [shape = 'u32[72,128]{1,0:T(1,128)}', space=vmem, size = 0x9000, scoped, tag = 'internal scratch']
  %s0 = inlined_call_operand.hbm [shape: f32[4,16,128], index: 0, kind: input, shape index: {}]
  %s1 = inlined_call_operand.hbm [shape: f32[16,128], index: 1, kind: input, shape index: {}]
  %s2 = inlined_call_operand.hbm [shape: f32[16,128], index: 2, kind: input, shape index: {}]
  %s3 = inlined_call_operand.hbm [shape: f32[128,128], index: 3, kind: input, shape index: {}]
  %s4 = inlined_call_operand.hbm [shape: f32[4,16,128], index: 4, kind: output, shape index: {}]
  %s5 = sld [smem:[#allocation0]]
  $region65: #{tpu_custom_call.1} parent=0
    _
  %s7 = ssub.s32 1, %s5
  %s8 = scalar_select 0, %s7, %s5
  $region1: #{tpu_custom_call.1} parent=0
    #allocation2 [shape = 'u8[16384]{0}', space=vmem, size = 0x4000, scoped, tag = 'input window, operand 0']
    #allocation3 [shape = 's32[2]{0}', space=sflag, size = 0x8, scoped, tag = 'scoped memory for tpu_custom_call.1']
    #allocation4 [shape = 's32[2]{0}', space=sflag, size = 0x8, scoped, tag = 'scoped memory for tpu_custom_call.1']
    #allocation5 [shape = 'u8[8192]{0}', space=vmem, size = 0x2000, scoped, tag = 'input window, operand 1, single buffered']
    #allocation6 [shape = 's32[1]{0}', space=sflag, size = 0x4, scoped, tag = 'scoped memory for tpu_custom_call.1']
    #allocation7 [shape = 'u8[8192]{0}', space=vmem, size = 0x2000, scoped, tag = 'input window, operand 2, single buffered']
    #allocation8 [shape = 'u8[65536]{0}', space=vmem, size = 0x10000, scoped, tag = 'input window, operand 3, single buffered']
    #allocation9 [shape = 's32[1]{0}', space=sflag, size = 0x4, scoped, tag = 'scoped memory for tpu_custom_call.1']
    #allocation10 [shape = 'u8[16384]{0}', space=vmem, size = 0x4000, scoped, tag = 'output window, operand 0']
    %9 = vsyncpa [#allocation3], 0
    %s10 = scalar_lea.sflag [#allocation3], 1
    %11 = vsyncpa %s10, 0
    %12 = vsyncpa [#allocation6], 0
    %13 = vsyncpa [#allocation9], 0
    %14 = vsyncpa [#allocation4], 0
    %s15 = scalar_lea.sflag [#allocation4], 1
    %16 = vsyncpa %s15, 0
    loop: start=0, step=1, limit=6
    $region2: #{tpu_custom_call.1} parent=1 // loop_pre_header
      _
    $region3: #{tpu_custom_call.1} parent=1 // loop_header
      %s18 = sphi 0, %s22
      %p19 = scmp.ge.s32.totalorder %s18, 6
      %s25 = sphi 0, %s37
      %s26 = sphi 0, %s33
      %s27 = sphi 0, %s25
      %s28 = sphi 0, %s26
      %s29 = sphi 0, %s27
      %s30 = sphi 0, %s28
      %s42 = sphi 0, %s44
      %s45 = sphi 0, %s42
      %s46 = sphi 0, %s45
      %s62 = sphi 0, %s46
      %s68 = sphi 0, %s70
      %s71 = sphi 0, %s68
      %s72 = sphi 0, %s71
      %s88 = sphi 0, %s72
      %s94 = sphi 0, %s96
      %s97 = sphi 0, %s94
      %s98 = sphi 0, %s97
      %s114 = sphi 0, %s98
      %s118 = sphi 0, %s118
      %s120 = sphi 0, %s118
      %s121 = sphi 0, %s120
      %s135 = sphi 0, %s121
      %s143 = sphi 0, %s145
      %s146 = sphi 0, %s143
      %s147 = sphi 0, %s146
      %s163 = sphi 0, %s147
    $region4: #{tpu_custom_call.1} parent=1 // loop_header_branch
      %21 = sbr.rel (%p19) target = $region8
    $region5: #{tpu_custom_call.1} parent=1 // loop_body
      %s23 = ssub.s32 %s18, 1
      %s24 = ssub.s32 %s18, 2
      %s31 = sadd.s32 1, %s26
      %p32 = scmp.ge.s32.totalorder %s31, 1
      %s33 = scalar_select %p32, 0, %s31
      %s34 = sadd.s32 1, %s25
      %s35 = scalar_select %p32, %s34, %s25
      %p36 = scmp.ge.s32.totalorder %s35, 4
      %s37 = scalar_select %p36, 0, %s35
      %s38 = ssub.s32 %s25, %s37
      %s39 = ssub.s32 %s26, %s33
      %s40 = sor.u32 %s38, %s39
      %p41 = scmp.eq.s32.totalorder %s40, 0
      %s43 = sadd.s32 %s42, 1
      %s44 = scalar_select %p41, %s42, %s43
      %p47 = pneg %p41
      %p48 = scmp.eq.s32.totalorder %s18, 3
      %p49 = por %p47, %p48
      %p50 = scmp.ne.s32.totalorder %s42, %s45
      %p51 = scmp.eq.s32.totalorder %s18, 0
      %p52 = por %p50, %p51
      %p53 = scmp.ne.s32.totalorder %s42, %s45
      %p54 = scmp.eq.s32.totalorder %s23, 3
      %p55 = por %p53, %p54
      %p56 = scmp.ne.s32.totalorder %s45, %s46
      %p57 = scmp.eq.s32.totalorder %s23, 0
      %p58 = por %p56, %p57
      %p59 = scmp.ne.s32.totalorder %s45, %s46
      %p60 = scmp.eq.s32.totalorder %s24, 3
      %p61 = por %p59, %p60
      %p63 = scmp.ne.s32.totalorder %s46, %s62
      %p64 = scmp.eq.s32.totalorder %s24, 0
      %p65 = por %p63, %p64
      %s66 = ssub.s32 %s26, %s33
      %p67 = scmp.eq.s32.totalorder %s66, 0
      %s69 = sadd.s32 %s68, 1
      %s70 = scalar_select %p67, %s68, %s69
      %p73 = pneg %p67
      %p74 = scmp.eq.s32.totalorder %s18, 3
      %p75 = por %p73, %p74
      %p76 = scmp.ne.s32.totalorder %s68, %s71
      %p77 = scmp.eq.s32.totalorder %s18, 0
      %p78 = por %p76, %p77
      %p79 = scmp.ne.s32.totalorder %s68, %s71
      %p80 = scmp.eq.s32.totalorder %s23, 3
      %p81 = por %p79, %p80
      %p82 = scmp.ne.s32.totalorder %s71, %s72
      %p83 = scmp.eq.s32.totalorder %s23, 0
      %p84 = por %p82, %p83
      %p85 = scmp.ne.s32.totalorder %s71, %s72
      %p86 = scmp.eq.s32.totalorder %s24, 3
      %p87 = por %p85, %p86
      %p89 = scmp.ne.s32.totalorder %s72, %s88
      %p90 = scmp.eq.s32.totalorder %s24, 0
      %p91 = por %p89, %p90
      %s92 = ssub.s32 %s26, %s33
      %p93 = scmp.eq.s32.totalorder %s92, 0
      %s95 = sadd.s32 %s94, 1
      %s96 = scalar_select %p93, %s94, %s95
      %p99 = pneg %p93
      %p100 = scmp.eq.s32.totalorder %s18, 3
      %p101 = por %p99, %p100
      %p102 = scmp.ne.s32.totalorder %s94, %s97
      %p103 = scmp.eq.s32.totalorder %s18, 0
      %p104 = por %p102, %p103
      %p105 = scmp.ne.s32.totalorder %s94, %s97
      %p106 = scmp.eq.s32.totalorder %s23, 3
      %p107 = por %p105, %p106
      %p108 = scmp.ne.s32.totalorder %s97, %s98
      %p109 = scmp.eq.s32.totalorder %s23, 0
      %p110 = por %p108, %p109
      %p111 = scmp.ne.s32.totalorder %s97, %s98
      %p112 = scmp.eq.s32.totalorder %s24, 3
      %p113 = por %p111, %p112
      %p115 = scmp.ne.s32.totalorder %s98, %s114
      %p116 = scmp.eq.s32.totalorder %s24, 0
      %p117 = por %p115, %p116
      %s119 = sadd.s32 %s118, 1
      %p122 = scmp.eq.s32.totalorder %s18, 3
      %p123 = scmp.ne.s32.totalorder %s118, %s120
      %p124 = scmp.eq.s32.totalorder %s18, 0
      %p125 = por %p123, %p124
      %p126 = scmp.ne.s32.totalorder %s118, %s120
      %p127 = scmp.eq.s32.totalorder %s23, 3
      %p128 = por %p126, %p127
      %p129 = scmp.ne.s32.totalorder %s120, %s121
      %p130 = scmp.eq.s32.totalorder %s23, 0
      %p131 = por %p129, %p130
      %p132 = scmp.ne.s32.totalorder %s120, %s121
      %p133 = scmp.eq.s32.totalorder %s24, 3
      %p134 = por %p132, %p133
      %p136 = scmp.ne.s32.totalorder %s121, %s135
      %p137 = scmp.eq.s32.totalorder %s24, 0
      %p138 = por %p136, %p137
      %s139 = ssub.s32 %s25, %s37
      %s140 = ssub.s32 %s26, %s33
      %s141 = sor.u32 %s139, %s140
      %p142 = scmp.eq.s32.totalorder %s141, 0
      %s144 = sadd.s32 %s143, 1
      %s145 = scalar_select %p142, %s143, %s144
      %p148 = pneg %p142
      %p149 = scmp.eq.s32.totalorder %s18, 3
      %p150 = por %p148, %p149
      %p151 = scmp.ne.s32.totalorder %s143, %s146
      %p152 = scmp.eq.s32.totalorder %s18, 0
      %p153 = por %p151, %p152
      %p154 = scmp.ne.s32.totalorder %s143, %s146
      %p155 = scmp.eq.s32.totalorder %s23, 3
      %p156 = por %p154, %p155
      %p157 = scmp.ne.s32.totalorder %s146, %s147
      %p158 = scmp.eq.s32.totalorder %s23, 0
      %p159 = por %p157, %p158
      %p160 = scmp.ne.s32.totalorder %s146, %s147
      %p161 = scmp.eq.s32.totalorder %s24, 3
      %p162 = por %p160, %p161
      %p164 = scmp.ne.s32.totalorder %s147, %s163
      %p165 = scmp.eq.s32.totalorder %s24, 0
      %p166 = por %p164, %p165
      %p167 = scmp.le.s32.totalorder 1, %s18
      %p168 = scmp.lt.s32.totalorder %s18, 5
      %p169 = pnand %p167, %p168
      %p170 = pneg %p169
      // Predicated region
      $region9: #{tpu_custom_call.1} parent=5 // pred_check
        _
      $region10: #{tpu_custom_call.1} parent=5 // pred_check_branch
        %172 = sbr.rel (%p169) target = $region12
      $region11: #{tpu_custom_call.1} parent=5 // pred_region
        %s173 = ssub.s32 %s18, 1
        // Predicated region
        $region13: #{tpu_custom_call.1} parent=11 // pred_check
          %p174 = pneg %p84
        $region14: #{tpu_custom_call.1} parent=11 // pred_check_branch
          %176 = sbr.rel (%p174) target = $region16
        $region15: #{tpu_custom_call.1} parent=11 // pred_region
          %s177 = smul.u32 2, %s28
          %179 = vsyncadd [#allocation6], 0
          %s180 = smul.addr %s177, 8
          %s181 = scalar_lea.hbm %s1, %s180
          %s182 = sshll.u32 %s181, 4
          %s183 = int_to_ptr.hbm [resolvable:$true] %s182
          %s184 = sshll.u32 [#allocation5], 4
          %s185 = int_to_ptr.vmem [resolvable:$true] %s184
          %190 = dma.hbm_to_vmem [thread:$0]  %s183, 256, %s185, [#allocation6], 128, 128, 8
        $region16: #{tpu_custom_call.1} parent=11 // pred_fallthru
          _
        // Predicated region
        $region17: #{tpu_custom_call.1} parent=11 // pred_check
          %p191 = pneg %p110
        $region18: #{tpu_custom_call.1} parent=11 // pred_check_branch
          %193 = sbr.rel (%p191) target = $region20
        $region19: #{tpu_custom_call.1} parent=11 // pred_region
          %s194 = smul.u32 2, %s28
          %196 = vsyncadd [#allocation6], 0
          %s197 = smul.addr %s194, 8
          %s198 = scalar_lea.hbm %s2, %s197
          %s199 = sshll.u32 %s198, 4
          %s200 = int_to_ptr.hbm [resolvable:$true] %s199
          %s201 = sshll.u32 [#allocation7], 4
          %s202 = int_to_ptr.vmem [resolvable:$true] %s201
          %207 = dma.hbm_to_vmem [thread:$0]  %s200, 256, %s202, [#allocation6], 128, 128, 8
        $region20: #{tpu_custom_call.1} parent=11 // pred_fallthru
          _
        // Predicated region
        $region21: #{tpu_custom_call.1} parent=11 // pred_check
          %p208 = pneg %p131
        $region22: #{tpu_custom_call.1} parent=11 // pred_check_branch
          %210 = sbr.rel (%p208) target = $region24
        $region23: #{tpu_custom_call.1} parent=11 // pred_region
          %212 = vsyncadd [#allocation9], 0
          %s213 = sshll.u32 %s3, 4
          %s214 = int_to_ptr.hbm [resolvable:$true] %s213
          %s215 = sshll.u32 [#allocation8], 4
          %s216 = int_to_ptr.vmem [resolvable:$true] %s215
          %221 = dma.hbm_to_vmem [thread:$0]  %s214, 2048, %s216, [#allocation9], 128, 128, 8
        $region24: #{tpu_custom_call.1} parent=11 // pred_fallthru
          _
      $region12: #{tpu_custom_call.1} parent=5 // pred_fallthru
        _
      %p222 = scmp.lt.s32.totalorder %s18, 4
      // Predicated region
      $region25: #{tpu_custom_call.1} parent=5 // pred_check
        %p223 = pneg %p222
      $region26: #{tpu_custom_call.1} parent=5 // pred_check_branch
        %225 = sbr.rel (%p223) target = $region28
      $region27: #{tpu_custom_call.1} parent=5 // pred_region
        // Predicated region
        $region29: #{tpu_custom_call.1} parent=27 // pred_check
          %p226 = pneg %p52
        $region30: #{tpu_custom_call.1} parent=27 // pred_check_branch
          %228 = sbr.rel (%p226) target = $region32
        $region31: #{tpu_custom_call.1} parent=27 // pred_region
          %s229 = sand.u32 %s42, 1
          %s230 = scalar_lea.sflag [#allocation3], %s229
          %s231 = sand.u32 %s42, 1
          %s232 = smul.addr %s231, 16
          %s233 = scalar_lea.vmem [#allocation2], %s232
          %s234 = smul.u32 2, %s26
          %236 = vsyncadd %s230, 0
          %s237 = smul.addr %s25, 2
          %s238 = sadd.s32 %s234, %s237
          %s239 = smul.addr %s238, 8
          %s240 = scalar_lea.hbm %s0, %s239
          %s241 = sshll.u32 %s240, 4
          %s242 = int_to_ptr.hbm [resolvable:$true] %s241
          %s243 = sshll.u32 %s233, 4
          %s244 = int_to_ptr.vmem [resolvable:$true] %s243
          %249 = dma.hbm_to_vmem [thread:$0]  %s242, 256, %s244, %s230, 128, 128, 8
        $region32: #{tpu_custom_call.1} parent=27 // pred_fallthru
          _
      $region28: #{tpu_custom_call.1} parent=5 // pred_fallthru
        _
      %p250 = scmp.le.s32.totalorder 1, %s18
      %p251 = scmp.lt.s32.totalorder %s18, 5
      %p252 = pnand %p250, %p251
      %p253 = pneg %p252
      // Predicated region
      $region33: #{tpu_custom_call.1} parent=5 // pred_check
        _
      $region34: #{tpu_custom_call.1} parent=5 // pred_check_branch
        %255 = sbr.rel (%p252) target = $region36
      $region35: #{tpu_custom_call.1} parent=5 // pred_region
        %s256 = ssub.s32 %s18, 1
        %s257 = sand.u32 %s45, 1
        %s258 = scalar_lea.sflag [#allocation3], %s257
        %s259 = sand.u32 %s45, 1
        %s260 = smul.addr %s259, 16
        %s261 = scalar_lea.vmem [#allocation2], %s260
        // Predicated region
        $region37: #{tpu_custom_call.1} parent=35 // pred_check
          %p262 = pneg %p58
        $region38: #{tpu_custom_call.1} parent=35 // pred_check_branch
          %264 = sbr.rel (%p262) target = $region40
        $region39: #{tpu_custom_call.1} parent=35 // pred_region
          %266 = dma.done %s258, 256
        $region40: #{tpu_custom_call.1} parent=35 // pred_fallthru
          _
        // Predicated region
        $region41: #{tpu_custom_call.1} parent=35 // pred_check
          %p267 = pneg %p84
        $region42: #{tpu_custom_call.1} parent=35 // pred_check_branch
          %269 = sbr.rel (%p267) target = $region44
        $region43: #{tpu_custom_call.1} parent=35 // pred_region
          %271 = dma.done [#allocation6], 256
        $region44: #{tpu_custom_call.1} parent=35 // pred_fallthru
          _
        // Predicated region
        $region45: #{tpu_custom_call.1} parent=35 // pred_check
          %p272 = pneg %p110
        $region46: #{tpu_custom_call.1} parent=35 // pred_check_branch
          %274 = sbr.rel (%p272) target = $region48
        $region47: #{tpu_custom_call.1} parent=35 // pred_region
          %276 = dma.done [#allocation6], 256
        $region48: #{tpu_custom_call.1} parent=35 // pred_fallthru
          _
        // Predicated region
        $region49: #{tpu_custom_call.1} parent=35 // pred_check
          %p277 = pneg %p131
        $region50: #{tpu_custom_call.1} parent=35 // pred_check_branch
          %279 = sbr.rel (%p277) target = $region52
        $region51: #{tpu_custom_call.1} parent=35 // pred_region
          %281 = dma.done [#allocation9], 2048
        $region52: #{tpu_custom_call.1} parent=35 // pred_fallthru
          _
        %s282 = sand.u32 %s45, 1
        %s283 = scalar_lea.sflag [#allocation3], %s282
        %s284 = sand.u32 %s45, 1
        %s285 = smul.addr %s284, 16
        %s286 = scalar_lea.vmem [#allocation2], %s285
        %p287 = pneg %p58
        %p288 = pneg %p55
        %p289 = pneg %p84
        %p290 = pneg %p81
        %p291 = pneg %p110
        %p292 = pneg %p107
        %p293 = pneg %p131
        %p294 = pneg %p128
        %p295 = pneg %p159
        %p296 = pneg %p156
        %s297 = sand.u32 %s146, 1
        %s298 = scalar_lea.sflag [#allocation4], %s297
        %s299 = sand.u32 %s146, 1
        %s300 = smul.addr %s299, 16
        %s301 = scalar_lea.vmem [#allocation10], %s300
        %s302 = smul.u32 2, %s28
        %s303 = smul.u32 2, %s28
        %s304 = smul.u32 2, %s28
        %s305 = smul.u32 2, %s28
        %v306 = vld [vmem:[%s261] sm:$0xff]
        %v307 = vld [vmem:[%s261 + $0x8] sm:$0xff]
        %v308 = vld [vmem:[#allocation8] sm:$0xff]
        %v309 = vld [vmem:[#allocation8 + $0x8] sm:$0xff]
        %v310 = vld [vmem:[#allocation8 + $0x10] sm:$0xff]
        %v311 = vld [vmem:[#allocation8 + $0x18] sm:$0xff]
        %v312 = vld [vmem:[#allocation8 + $0x20] sm:$0xff]
        %v313 = vld [vmem:[#allocation8 + $0x28] sm:$0xff]
        %v314 = vld [vmem:[#allocation8 + $0x30] sm:$0xff]
        %v315 = vld [vmem:[#allocation8 + $0x38] sm:$0xff]
        %v316 = vld [vmem:[#allocation8 + $0x40] sm:$0xff]
        %v317 = vld [vmem:[#allocation8 + $0x48] sm:$0xff]
        %v318 = vld [vmem:[#allocation8 + $0x50] sm:$0xff]
        %v319 = vld [vmem:[#allocation8 + $0x58] sm:$0xff]
        %v320 = vld [vmem:[#allocation8 + $0x60] sm:$0xff]
        %v321 = vld [vmem:[#allocation8 + $0x68] sm:$0xff]
        %v322 = vld [vmem:[#allocation8 + $0x70] sm:$0xff]
        %v323 = vld [vmem:[#allocation8 + $0x78] sm:$0xff]
        %324 = vmatpush.msra.mxu0 %v323
        %325 = vmatpush.msra.mxu0 %v322
        %326 = vmatpush.msra.mxu0 %v321
        %327 = vmatpush.msra.mxu0 %v320
        %328 = vmatpush.msra.mxu0 %v319
        %329 = vmatpush.msra.mxu0 %v318
        %330 = vmatpush.msra.mxu0 %v317
        %331 = vmatpush.msra.mxu0 %v316
        %332 = vmatpush.msra.mxu0 %v315
        %333 = vmatpush.msra.mxu0 %v314
        %334 = vmatpush.msra.mxu0 %v313
        %335 = vmatpush.msra.mxu0 %v312
        %336 = vmatpush.msra.mxu0 %v311
        %337 = vmatpush.msra.mxu0 %v310
        %338 = vmatpush.msra.mxu0 %v309
        %339 = vmatpush.msra.mxu0 %v308
        %340 = vmatmul.f32.gmra.mxu0 %v306
        %v341 = vpop.f32.mrf.mxu0
        %v342 = vadd.f32 0.0, %v341
        %343 = vmatmul.f32.gmra.mxu0 %v307
        %v344 = vpop.f32.mrf.mxu0
        %v345 = vadd.f32 0.0, %v344
        %346 = vdwg.mxu0
        %v347 = vld [vmem:[#allocation5] sm:$0xff]
        %v348 = vld [vmem:[#allocation5 + $0x8] sm:$0xff]
        %v349 = vmul.f32 %v306, %v347
        %v350 = vmul.f32 %v307, %v348
        %v351 = vld [vmem:[#allocation7] sm:$0xff]
        %v352 = vld [vmem:[#allocation7 + $0x8] sm:$0xff]
        %v353 = vmul.f32 %v342, %v351
        %v354 = vmul.f32 %v345, %v352
        %v355 = vadd.f32 %v349, %v353
        %v356 = vadd.f32 %v350, %v354
        %357 = vst [vmem:[%s301] sm:$0xff] %v355
        %358 = vst [vmem:[%s301 + $0x8] sm:$0xff] %v356
        %s359 = sand.u32 %s146, 1
        %s360 = scalar_lea.sflag [#allocation4], %s359
        %s361 = sand.u32 %s146, 1
        %s362 = smul.addr %s361, 16
        %s363 = scalar_lea.vmem [#allocation10], %s362
        // Predicated region
        $region53: #{tpu_custom_call.1} parent=35 // pred_check
          %p364 = pneg %p156
        $region54: #{tpu_custom_call.1} parent=35 // pred_check_branch
          %366 = sbr.rel (%p364) target = $region56
        $region55: #{tpu_custom_call.1} parent=35 // pred_region
          %s367 = smul.u32 2, %s28
          %369 = vsyncadd %s360, 0
          %s370 = smul.addr %s27, 2
          %s371 = sadd.s32 %s367, %s370
          %s372 = smul.addr %s371, 8
          %s373 = scalar_lea.hbm %s4, %s372
          %s374 = sshll.u32 %s363, 4
          %s375 = int_to_ptr.vmem [resolvable:$true] %s374
          %s376 = sshll.u32 %s373, 4
          %s377 = int_to_ptr.hbm [resolvable:$true] %s376
          %382 = dma.vmem_to_hbm [thread:$0]  %s375, 256, %s377, %s360, 128, 128, 8
        $region56: #{tpu_custom_call.1} parent=35 // pred_fallthru
          _
      $region36: #{tpu_custom_call.1} parent=5 // pred_fallthru
        _
      %p383 = scmp.le.s32.totalorder 2, %s18
      // Predicated region
      $region57: #{tpu_custom_call.1} parent=5 // pred_check
        %p384 = pneg %p383
      $region58: #{tpu_custom_call.1} parent=5 // pred_check_branch
        %386 = sbr.rel (%p384) target = $region60
      $region59: #{tpu_custom_call.1} parent=5 // pred_region
        %s387 = ssub.s32 %s18, 2
        // Predicated region
        $region61: #{tpu_custom_call.1} parent=59 // pred_check
          %p388 = pneg %p162
        $region62: #{tpu_custom_call.1} parent=59 // pred_check_branch
          %390 = sbr.rel (%p388) target = $region64
        $region63: #{tpu_custom_call.1} parent=59 // pred_region
          %s391 = sand.u32 %s147, 1
          %s392 = scalar_lea.sflag [#allocation4], %s391
          %s393 = sand.u32 %s147, 1
          %s394 = smul.addr %s393, 16
          %s395 = scalar_lea.vmem [#allocation10], %s394
          %397 = dma.done %s392, 256
        $region64: #{tpu_custom_call.1} parent=59 // pred_fallthru
          _
      $region60: #{tpu_custom_call.1} parent=5 // pred_fallthru
        _
    $region6: #{tpu_custom_call.1} parent=1 // loop_footer
      %s22 = sadd.s32 1, %s18
    $region7: #{tpu_custom_call.1} parent=1 // loop_footer_branch
      %17 = sbr.rel target = $region3
    $region8: #{tpu_custom_call.1} parent=1 // loop_exit
      _
    %398 = vsyncpa [#allocation3], 1
    %s399 = scalar_lea.sflag [#allocation3], 1
    %400 = vsyncpa %s399, 1
    %401 = vsyncpa [#allocation6], 1
    %402 = vsyncpa [#allocation9], 1
    %403 = vsyncpa [#allocation4], 1
    %s404 = scalar_lea.sflag [#allocation4], 1
    %405 = vsyncpa %s404, 1

</llo_original>
